<compile_context>
chip_gen: v6e
topology: v6e:2x2x1
jax: 0.10.0
libtpu: 0.0.40
codegen_flags: <defaults>
</compile_context>

<pallas_src>
import functools

import jax
import jax.numpy as jnp
from jax import lax
from jax.experimental import pallas as pl
from jax.experimental.pallas import tpu as pltpu


def _round_up(x: int, m: int) -> int:
    return ((x + m - 1) // m) * m


def _divisor_tile(size: int, max_tile: int, align: int) -> int:
    """Largest multiple of `align` that divides `size` and is <= max_tile.

    `size` must itself be a multiple of `align`, so `align` is always a valid
    fallback and the loop terminates.
    """
    t = max(align, (min(max_tile, size) // align) * align)
    while size % t:
        t -= align
    return t


def _linear_kernel(x_ref, w_ref, b_ref, o_ref, acc_ref):
    # x_ref: (tm, tk) bf16, w_ref: (tk, tn) bf16 (W already transposed to (K, N)),
    # b_ref: (1, tn) f32, o_ref: (tm, tn) out dtype, acc_ref: (tm, tn) f32.
    k = pl.program_id(2)

    @pl.when(k == 0)
    def _init():
        acc_ref[...] = jnp.zeros_like(acc_ref)

    # Plain (1,0) contraction on the MXU with f32 accumulation — no in-kernel
    # transpose (W was pre-transposed at init), no XLU work in the K loop.
    acc_ref[...] += jnp.dot(x_ref[...], w_ref[...],
                            preferred_element_type=jnp.float32)

    @pl.when(k == pl.num_programs(2) - 1)
    def _finalize():
        # bias added exactly once, in f32, then a single cast to the output dtype.
        o_ref[...] = (acc_ref[...] + b_ref[...]).astype(o_ref.dtype)


@functools.partial(jax.jit, static_argnames=("n_out", "tm_max", "tn_max", "tk_max"))
def pallas_linear(x2d, w_kn, bias2d, *, n_out, tm_max=512, tn_max=512, tk_max=1024):
    """y = x2d @ W^T + b  (torch.nn.Linear semantics).

    x2d:    (M, K)  activations (any float dtype; cast to bf16 for the MXU)
    w_kn:   (Kp, Np) bf16, pre-transposed + 128-padded weight (prepared at init)
    bias2d: (1, Np)  f32, pre-padded bias
    """
    M, K = x2d.shape
    Kp, Np = w_kn.shape
    out_dtype = x2d.dtype

    # bf16 min tile is (16, 128): M is the sublane axis of the x tile.
    Mp = _round_up(M, 16)

    # Tiles are divisors of the padded dims -> no dead padded panels beyond the
    # 16/128 alignment round-up (e.g. N=384 gets tn in {128, 384}, never 512).
    tm = _divisor_tile(Mp, tm_max, 16)
    tn = _divisor_tile(Np, tn_max, 128)
    tk = _divisor_tile(Kp, tk_max, 128)

    # v7x has 2 TensorCores: make sure the "parallel" (i, j) part of the grid has
    # at least 2 blocks whenever the problem is big enough to split.
    if (Mp // tm) * (Np // tn) < 2:
        if Np // 128 >= 2:
            tn = _divisor_tile(Np, Np // 2, 128)
        elif Mp // 16 >= 2:
            tm = _divisor_tile(Mp, Mp // 2, 16)

    # Per-call activation prep only (weight/bias prep is hoisted to module init):
    # zero-pad M/K (zeros don't change the valid region), cast to bf16 for the MXU.
    if (Mp, Kp) != (M, K):
        x2d = jnp.pad(x2d, ((0, Mp - M), (0, Kp - K)))
    xb = x2d.astype(jnp.bfloat16)

    grid = (Mp // tm, Np // tn, Kp // tk)

    in_isz = 2  # bf16
    out_isz = jnp.dtype(out_dtype).itemsize
    cost = pl.CostEstimate(
        flops=2 * Mp * Np * Kp,
        transcendentals=0,
        bytes_accessed=(Mp * Kp * in_isz) * (Np // tn)     # x re-read per j block
        + (Kp * Np * in_isz) * (Mp // tm)                  # W re-read per i block
        + (Np * 4) * (Mp // tm)                            # bias
        + Mp * Np * out_isz,                               # output write
    )

    # Double-buffered inputs + double-buffered output + f32 accumulator, with
    # headroom, capped so it always fits v7x's 64 MiB physical VMEM (v5e/v6e: 128).
    vmem_est = (
        2 * (tm * tk * in_isz + tk * tn * in_isz + tn * 4)
        + 2 * tm * tn * out_isz
        + tm * tn * 4
    )
    vmem_limit = min(max(2 * vmem_est, 24 << 20), 48 << 20)

    out = pl.pallas_call(
        _linear_kernel,
        out_shape=jax.ShapeDtypeStruct((Mp, Np), out_dtype),
        grid_spec=pltpu.PrefetchScalarGridSpec(
            num_scalar_prefetch=0,
            grid=grid,
            in_specs=[
                pl.BlockSpec((tm, tk), lambda i, j, k: (i, k)),   # x tile (bf16)
                pl.BlockSpec((tk, tn), lambda i, j, k: (k, j)),   # W^T tile (bf16)
                pl.BlockSpec((1, tn), lambda i, j, k: (0, j)),    # bias tile (f32)
            ],
            out_specs=pl.BlockSpec((tm, tn), lambda i, j, k: (i, j)),
            scratch_shapes=[pltpu.VMEM((tm, tn), jnp.float32)],   # f32 accumulator
        ),
        compiler_params=pltpu.CompilerParams(
            # M/N parallel (megacore / v7x 2-TC sharding); K is the reduction ->
            # arbitrary, last.  Default double-buffering; TODO(synk): bump to
            # pl.Buffered(3) on x/W if xprof shows exposed DMA on v5e.
            dimension_semantics=("parallel", "parallel", "arbitrary"),
            vmem_limit_bytes=vmem_limit,
        ),
        cost_estimate=cost,
    )(xb, w_kn, bias2d)

    if (M, n_out) != (Mp, Np):
        out = out[:M, :n_out]
    return out


class InnerLinear:
    """Stand-in for the wrapped torch.nn.Module (nn.Linear)."""

    # Below this FLOP count a single fused XLA dot beats pallas_call launch +
    # pipeline overhead on every TPU generation.
    _PALLAS_MIN_FLOPS = 1 << 24

    def __init__(self, in_features, out_features, key, force_pallas=False):
        kw, kb = jax.random.split(key)
        bound = 1.0 / (in_features ** 0.5)
        self.weight = jax.random.uniform(
            kw, (out_features, in_features), jnp.float32, -bound, bound
        )
        self.bias = jax.random.uniform(
            kb, (out_features,), jnp.float32, -bound, bound
        )
        self.in_features = in_features
        self.out_features = out_features
        self.force_pallas = force_pallas

        # Hoisted weight preprocessing — done ONCE, not per forward call:
        # transpose to (K, N), zero-pad K/N to 128-multiples (lane-dense tiles),
        # cast to bf16 for the MXU.  Bias padded/reshaped once, kept f32.
        kp = _round_up(in_features, 128)
        np_ = _round_up(out_features, 128)
        w_kn = jnp.pad(self.weight.T,
                       ((0, kp - in_features), (0, np_ - out_features)))
        self.w_kn_bf16 = w_kn.astype(jnp.bfloat16)
        self.bias_padded = jnp.pad(self.bias, (0, np_ - out_features)).reshape(1, np_)
        # Note: bf16 inputs + f32 accumulation is standard TPU matmul numerics;
        # it differs from torch f32 Linear by bf16 input rounding (~1e-3 relative).

    def __call__(self, x):
        # x: (..., in_features) -> (..., out_features), like torch Linear
        lead = x.shape[:-1]
        x2d = x.reshape(-1, x.shape[-1])
        M, K = x2d.shape
        N = self.out_features
        if self.force_pallas or (2 * M * N * K) >= self._PALLAS_MIN_FLOPS:
            y2d = pallas_linear(x2d, self.w_kn_bf16, self.bias_padded, n_out=N)
        else:
            y2d = x2d @ self.weight.T + self.bias   # tiny shapes: plain XLA dot
        return y2d.reshape(*lead, N)


class NPUModuleWrapper:
    """Pass-through wrapper: forward(*args, **kwargs) == module(*args, **kwargs)."""

    def __init__(self, module):
        self.module = module
        # TODO(synk): NNFactory signature-cache / compile / record_function / .to('npu')
        # plumbing has no compute semantics; the pass-through forward is the only
        # behavior reproduced.

    def __call__(self, *args, **kwargs):
        return self.module(*args, **kwargs)


def _reference_linear_bf16(x, weight, bias):
    """Reference matching the kernel's numerics: bf16-rounded inputs, f32 accumulate."""
    lead = x.shape[:-1]
    x2d = x.reshape(-1, x.shape[-1]).astype(jnp.bfloat16).astype(jnp.float32)
    w = weight.astype(jnp.bfloat16).astype(jnp.float32)
    y2d = lax.dot_general(
        x2d, w,
        dimension_numbers=(((1,), (1,)), ((), ())),
        precision=lax.Precision.HIGHEST,
    ) + bias.astype(jnp.float32)
    return y2d.reshape(*lead, weight.shape[0])


if __name__ == "__main__":
    key = jax.random.PRNGKey(0)
    k_in, k_mod, k_in2, k_mod2 = jax.random.split(key, 4)

    # --- demo shape (small, matches the original script) -------------------------
    batch, seq, hidden, out_features = 2, 8, 32, 64
    x = jax.random.normal(k_in, (batch, seq, hidden), dtype=jnp.float32)

    inner = InnerLinear(hidden, out_features, k_mod, force_pallas=True)
    wrapped = NPUModuleWrapper(inner)

    y = wrapped(x)
    jax.block_until_ready(y)

    y_ref = _reference_linear_bf16(x, inner.weight, inner.bias)
    assert y.shape == (batch, seq, out_features)
    assert jnp.allclose(y, y_ref, atol=2e-3, rtol=2e-3)

    # --- a second, larger shape exercising K-accumulation and the N-split path ----
    batch2, seq2, hidden2, out2 = 2, 128, 1024, 384
    x2 = jax.random.normal(k_in2, (batch2, seq2, hidden2), dtype=jnp.float32)
    inner2 = InnerLinear(hidden2, out2, k_mod2, force_pallas=True)
    y2 = NPUModuleWrapper(inner2)(x2)
    jax.block_until_ready(y2)
    y2_ref = _reference_linear_bf16(x2, inner2.weight, inner2.bias)
    assert y2.shape == (batch2, seq2, out2)
    assert jnp.allclose(y2, y2_ref, atol=2e-3, rtol=2e-3)

    print("KERNEL_OK")
</pallas_src>

<mosaic_0001>
module attributes {stable_mosaic.version = 11 : i64} {
  func.func @_linear_kernel(%arg0: i32, %arg1: i32, %arg2: i32, %arg3: memref<16x128xbf16, #tpu.memory_space<vmem>>, %arg4: memref<128x128xbf16, #tpu.memory_space<vmem>>, %arg5: memref<1x128xf32, #tpu.memory_space<vmem>>, %arg6: memref<16x128xf32, #tpu.memory_space<vmem>>, %arg7: memref<16x128xf32, #tpu.memory_space<vmem>>) attributes {dimension_semantics = [#tpu.dimension_semantics<parallel>, #tpu.dimension_semantics<parallel>, #tpu.dimension_semantics<arbitrary>], iteration_bounds = array<i64: 1, 1, 1>, scalar_prefetch = 0 : i64, scratch_operands = 1 : i64, tpu.core_type = #tpu.core_type<tc>, window_params = [{transform_indices = @transform_0, window_bounds = array<i64: 16, 128>}, {transform_indices = @transform_1, window_bounds = array<i64: 128, 128>}, {transform_indices = @transform_2, window_bounds = array<i64: 1, 128>}, {transform_indices = @transform_3, window_bounds = array<i64: 16, 128>}]} {
    %c0_i32 = arith.constant 0 : i32
    %0 = arith.cmpi eq, %arg2, %c0_i32 : i32
    %1 = arith.extui %0 : i1 to i32
    %c0_i32_0 = arith.constant 0 : i32
    %2 = arith.cmpi ne, %1, %c0_i32_0 : i32
    scf.if %2 {
      %cst_10 = arith.constant 0.000000e+00 : f32
      %12 = vector.broadcast %cst_10 : f32 to vector<16x128xf32>
      %c0_11 = arith.constant 0 : index
      %c0_12 = arith.constant 0 : index
      %13 = vector.load %arg7[%c0_11, %c0_12] : memref<16x128xf32, #tpu.memory_space<vmem>>, vector<16x128xf32>
      tpu.vector_store %arg7[%c0_11, %c0_12], %12 {strides = array<i32>} : memref<16x128xf32, #tpu.memory_space<vmem>>, vector<16x128xf32>,
    } else {
    }
    %c0 = arith.constant 0 : index
    %c0_1 = arith.constant 0 : index
    %3 = vector.load %arg7[%c0, %c0_1] : memref<16x128xf32, #tpu.memory_space<vmem>>, vector<16x128xf32>
    %c0_2 = arith.constant 0 : index
    %c0_3 = arith.constant 0 : index
    %4 = vector.load %arg3[%c0_2, %c0_3] : memref<16x128xbf16, #tpu.memory_space<vmem>>, vector<16x128xbf16>
    %c0_4 = arith.constant 0 : index
    %c0_5 = arith.constant 0 : index
    %5 = vector.load %arg4[%c0_4, %c0_5] : memref<128x128xbf16, #tpu.memory_space<vmem>>, vector<128x128xbf16>
    %cst = arith.constant dense<0.000000e+00> : vector<16x128xf32>
    %6 = tpu.matmul %4, %5, %cst {dimension_numbers = #tpu.dot_dimension_numbers<[1], [0], [0], [1], [0, 0, 1, 1], [], []>} : vector<16x128xbf16>, vector<128x128xbf16>, vector<16x128xf32> -> vector<16x128xf32>
    %7 = arith.addf %3, %6 : vector<16x128xf32>
    %c0_6 = arith.constant 0 : index
    %c0_7 = arith.constant 0 : index
    %8 = vector.load %arg7[%c0_6, %c0_7] : memref<16x128xf32, #tpu.memory_space<vmem>>, vector<16x128xf32>
    tpu.vector_store %arg7[%c0_6, %c0_7], %7 {strides = array<i32>} : memref<16x128xf32, #tpu.memory_space<vmem>>, vector<16x128xf32>,
    %c0_i32_8 = arith.constant 0 : i32
    %9 = arith.cmpi eq, %arg2, %c0_i32_8 : i32
    %10 = arith.extui %9 : i1 to i32
    %c0_i32_9 = arith.constant 0 : i32
    %11 = arith.cmpi ne, %10, %c0_i32_9 : i32
    scf.if %11 {
      %c0_10 = arith.constant 0 : index
      %c0_11 = arith.constant 0 : index
      %12 = vector.load %arg7[%c0_10, %c0_11] : memref<16x128xf32, #tpu.memory_space<vmem>>, vector<16x128xf32>
      %c0_12 = arith.constant 0 : index
      %c0_13 = arith.constant 0 : index
      %13 = vector.load %arg5[%c0_12, %c0_13] : memref<1x128xf32, #tpu.memory_space<vmem>>, vector<1x128xf32>
      %14 = vector.broadcast %13 : vector<1x128xf32> to vector<16x128xf32>
      %15 = arith.addf %12, %14 : vector<16x128xf32>
      %c0_14 = arith.constant 0 : index
      %c0_15 = arith.constant 0 : index
      %16 = vector.load %arg6[%c0_14, %c0_15] : memref<16x128xf32, #tpu.memory_space<vmem>>, vector<16x128xf32>
      tpu.vector_store %arg6[%c0_14, %c0_15], %15 {strides = array<i32>} : memref<16x128xf32, #tpu.memory_space<vmem>>, vector<16x128xf32>,
    } else {
    }
    return
  }
  func.func @transform_0(%arg0: i32, %arg1: i32, %arg2: i32) -> (i32, i32) {
    %c0_i32 = arith.constant 0 : i32
    return %arg0, %arg2 : i32, i32
  }
  func.func @transform_1(%arg0: i32, %arg1: i32, %arg2: i32) -> (i32, i32) {
    %c0_i32 = arith.constant 0 : i32
    return %arg2, %arg1 : i32, i32
  }
  func.func @transform_2(%arg0: i32, %arg1: i32, %arg2: i32) -> (i32, i32) {
    %c0_i32 = arith.constant 0 : i32
    %c0_i32_0 = arith.constant 0 : i32
    return %c0_i32, %arg1 : i32, i32
  }
  func.func @transform_3(%arg0: i32, %arg1: i32, %arg2: i32) -> (i32, i32) {
    %c0_i32 = arith.constant 0 : i32
    return %arg0, %arg1 : i32, i32
  }
}

</mosaic_0001>

<llo_original>
// kernel: pallas_linear.1
$region0: #{pallas_linear.1}
  #allocation0 [shape = 'u32[]', space=smem, size = 0x4, offset = 0x4, fixed_abs, tag = 'smem constant byte address 0x4 - core index']
  #allocation1 [shape = 'u32[144,128]{1,0:T(1,128)}', space=vmem, size = 0x12000, scoped, tag = 'internal scratch']
  #allocation2 [shape = 'f32[16,128]{1,0:T(8,128)}', space=vmem, size = 0x2000, scoped, tag = 'scratch operand']
  %s0 = inlined_call_operand.vmem [shape: bf16[16,128], index: 0, kind: input, shape index: {}]
  %s1 = inlined_call_operand.hbm [shape: bf16[128,128], index: 1, kind: input, shape index: {}]
  %s2 = inlined_call_operand.vmem [shape: f32[1,128], index: 2, kind: input, shape index: {}]
  %s3 = inlined_call_operand.hbm [shape: f32[16,128], index: 3, kind: output, shape index: {}]
  %s4 = sld [smem:[#allocation0]]
  $region34: #{pallas_linear.1} parent=0
    _
  %s6 = ssub.s32 1, %s4
  %s7 = scalar_select 0, %s6, %s4
  $region1: #{pallas_linear.1} parent=0
    #allocation3 [shape = 'u8[32768]{0}', space=vmem, size = 0x8000, scoped, tag = 'input window, operand 1, single buffered']
    #allocation4 [shape = 's32[1]{0}', space=sflag, size = 0x4, scoped, tag = 'scoped memory for pallas_linear.1']
    #allocation5 [shape = 's32[1]{0}', space=sflag, size = 0x4, scoped, tag = 'scoped memory for pallas_linear.1']
    #allocation6 [shape = 'u8[8192]{0}', space=vmem, size = 0x2000, scoped, tag = 'output window, operand 0, single buffered']
    %8 = vsyncpa [#allocation4], 0
    %9 = vsyncpa [#allocation5], 0
    // Predicated region
    $region2: #{pallas_linear.1} parent=1 // pred_check
      _
    $region3: #{pallas_linear.1} parent=1 // pred_check_branch
      %11 = sbr.rel (0) target = $region5
    $region4: #{pallas_linear.1} parent=1 // pred_region
      _
    $region5: #{pallas_linear.1} parent=1 // pred_fallthru
      _
    // Predicated region
    $region6: #{pallas_linear.1} parent=1 // pred_check
      _
    $region7: #{pallas_linear.1} parent=1 // pred_check_branch
      %13 = sbr.rel (0) target = $region9
    $region8: #{pallas_linear.1} parent=1 // pred_region
      %s15 = ssub.s32 1024, 1024
      %16 = vsyncadd [#allocation4], %s15
      %s17 = sshll.u32 [#allocation3], 4
      %s18 = int_to_ptr.vmem [resolvable:$true] %s17
      %23 = dma.hbm_to_vmem [thread:$0]  %s1, 1024, %s18, [#allocation4], 64, 64, 4
    $region9: #{pallas_linear.1} parent=1 // pred_fallthru
      _
    // Predicated region
    $region10: #{pallas_linear.1} parent=1 // pred_check
      _
    $region11: #{pallas_linear.1} parent=1 // pred_check_branch
      %25 = sbr.rel (0) target = $region13
    $region12: #{pallas_linear.1} parent=1 // pred_region
      _
    $region13: #{pallas_linear.1} parent=1 // pred_fallthru
      _
    // Predicated region
    $region14: #{pallas_linear.1} parent=1 // pred_check
      _
    $region15: #{pallas_linear.1} parent=1 // pred_check_branch
      %27 = sbr.rel (0) target = $region17
    $region16: #{pallas_linear.1} parent=1 // pred_region
      %28 = dma.done [#allocation4], 1024
    $region17: #{pallas_linear.1} parent=1 // pred_fallthru
      _
    %p30 = scmp.eq.s32.totalorder 0, 0
    // Predicated region
    $region18: #{pallas_linear.1} parent=1 // pred_check
      %p31 = pneg %p30
    $region19: #{pallas_linear.1} parent=1 // pred_check_branch
      %33 = sbr.rel (%p31) target = $region21
    $region20: #{pallas_linear.1} parent=1 // pred_region
      %34 = vst [vmem:[#allocation2] sm:$0xff] 0.0
      %35 = vst [vmem:[#allocation2 + $0x8] sm:$0xff] 0.0
    $region21: #{pallas_linear.1} parent=1 // pred_fallthru
      _
    %v36 = vld [vmem:[#allocation2] sm:$0xff]
    %v37 = vld [vmem:[#allocation2 + $0x8] sm:$0xff]
    %v38 = vld [vmem:[%s0] sm:$0xf]
    %v39 = vld [vmem:[%s0 + $0x4] sm:$0xf]
    %v40 = vld [vmem:[#allocation3] sm:$0xf]
    %v41 = vld [vmem:[#allocation3 + $0x4] sm:$0xf]
    %v42 = vld [vmem:[#allocation3 + $0x8] sm:$0xf]
    %v43 = vld [vmem:[#allocation3 + $0xc] sm:$0xf]
    %v44 = vld [vmem:[#allocation3 + $0x10] sm:$0xf]
    %v45 = vld [vmem:[#allocation3 + $0x14] sm:$0xf]
    %v46 = vld [vmem:[#allocation3 + $0x18] sm:$0xf]
    %v47 = vld [vmem:[#allocation3 + $0x1c] sm:$0xf]
    %v48 = vld [vmem:[#allocation3 + $0x20] sm:$0xf]
    %v49 = vld [vmem:[#allocation3 + $0x24] sm:$0xf]
    %v50 = vld [vmem:[#allocation3 + $0x28] sm:$0xf]
    %v51 = vld [vmem:[#allocation3 + $0x2c] sm:$0xf]
    %v52 = vld [vmem:[#allocation3 + $0x30] sm:$0xf]
    %v53 = vld [vmem:[#allocation3 + $0x34] sm:$0xf]
    %v54 = vld [vmem:[#allocation3 + $0x38] sm:$0xf]
    %v55 = vld [vmem:[#allocation3 + $0x3c] sm:$0xf]
    %v58 = vunpack.c.l.b16 %v38
    %v59 = vunpack.c.l.b16 %v39
    %v60 = vpack.c.b16 %v59, %v58
    %v78 = vunpack.c.l.b16 %v40
    %v79 = vunpack.c.l.b16 %v41
    %v80 = vunpack.c.l.b16 %v42
    %v81 = vunpack.c.l.b16 %v43
    %v82 = vunpack.c.l.b16 %v44
    %v83 = vunpack.c.l.b16 %v45
    %v84 = vunpack.c.l.b16 %v46
    %v85 = vunpack.c.l.b16 %v47
    %v86 = vunpack.c.l.b16 %v48
    %v87 = vunpack.c.l.b16 %v49
    %v88 = vunpack.c.l.b16 %v50
    %v89 = vunpack.c.l.b16 %v51
    %v90 = vunpack.c.l.b16 %v52
    %v91 = vunpack.c.l.b16 %v53
    %v92 = vunpack.c.l.b16 %v54
    %v93 = vunpack.c.l.b16 %v55
    %v94 = vpack.c.b16 %v79, %v78
    %v95 = vpack.c.b16 %v81, %v80
    %v96 = vpack.c.b16 %v83, %v82
    %v97 = vpack.c.b16 %v85, %v84
    %v98 = vpack.c.b16 %v87, %v86
    %v99 = vpack.c.b16 %v89, %v88
    %v100 = vpack.c.b16 %v91, %v90
    %v101 = vpack.c.b16 %v93, %v92
    %110 = vmatprep.subr.bf16.mxu0 0
    %111 = vmatpush1.bf16.msra.mxu0 %v101
    %112 = vmatprep.subr.bf16.mxu0 0
    %113 = vmatpush1.bf16.msra.mxu0 %v100
    %114 = vmatprep.subr.bf16.mxu0 0
    %115 = vmatpush1.bf16.msra.mxu0 %v99
    %116 = vmatprep.subr.bf16.mxu0 0
    %117 = vmatpush1.bf16.msra.mxu0 %v98
    %118 = vmatprep.subr.bf16.mxu0 0
    %119 = vmatpush1.bf16.msra.mxu0 %v97
    %120 = vmatprep.subr.bf16.mxu0 0
    %121 = vmatpush1.bf16.msra.mxu0 %v96
    %122 = vmatprep.subr.bf16.mxu0 0
    %123 = vmatpush1.bf16.msra.mxu0 %v95
    %124 = vmatprep.subr.bf16.mxu0 0
    %125 = vmatpush1.bf16.msra.mxu0 %v94
    %126 = vmatprep.subr.bf16.mxu0 0
    %127 = vmatpush2.bf16.msra.mxu0 0
    %128 = vmatprep.subr.bf16.mxu0 0
    %129 = vmatpush2.bf16.msra.mxu0 0
    %130 = vmatprep.subr.bf16.mxu0 0
    %131 = vmatpush2.bf16.msra.mxu0 0
    %132 = vmatprep.subr.bf16.mxu0 0
    %133 = vmatpush2.bf16.msra.mxu0 0
    %134 = vmatprep.subr.bf16.mxu0 0
    %135 = vmatpush2.bf16.msra.mxu0 0
    %136 = vmatprep.subr.bf16.mxu0 0
    %137 = vmatpush2.bf16.msra.mxu0 0
    %138 = vmatprep.subr.bf16.mxu0 0
    %139 = vmatpush2.bf16.msra.mxu0 0
    %140 = vmatprep.subr.bf16.mxu0 0
    %141 = vmatpush2.bf16.msra.mxu0 0
    %142 = vmatprep.mubr.bf16.mxu0 0
    %143 = vmatmul.mubr.bf16.gmra.mxu0 %v60
    %v144 = vpop.f32.mrf.mxu0
    %v145 = vadd.f32 0.0, %v144
    %v146 = vpop.f32.mrf.mxu0
    %v147 = vpop.f32.mrf.mxu0
    %v148 = vadd.f32 0.0, %v147
    %v149 = vpop.f32.mrf.mxu0
    %150 = vdwg.mxu0
    %v151 = vadd.f32 %v36, %v145
    %v152 = vadd.f32 %v37, %v148
    %153 = vst [vmem:[#allocation2] sm:$0xff] %v151
    %154 = vst [vmem:[#allocation2 + $0x8] sm:$0xff] %v152
    // Predicated region
    $region22: #{pallas_linear.1} parent=1 // pred_check
      %p155 = pneg %p30
    $region23: #{pallas_linear.1} parent=1 // pred_check_branch
      %157 = sbr.rel (%p155) target = $region25
    $region24: #{pallas_linear.1} parent=1 // pred_region
      %v158 = vld [vmem:[#allocation2] sm:$0xff]
      %v159 = vld [vmem:[#allocation2 + $0x8] sm:$0xff]
      %v160 = vld [vmem:[%s2] sm:$0x1]
      %v162 = vlaneseq
      %v163 = vshrl.u32 %v162, 7
      %v164 = vsub.s32 0, %v163
      %v165 = vrot.slane %v160, %v164
      %v167 = vadd.f32 %v158, %v165
      %v168 = vadd.f32 %v159, %v165
      %169 = vst [vmem:[#allocation6] sm:$0xff] %v167
      %170 = vst [vmem:[#allocation6 + $0x8] sm:$0xff] %v168
    $region25: #{pallas_linear.1} parent=1 // pred_fallthru
      _
    // Predicated region
    $region26: #{pallas_linear.1} parent=1 // pred_check
      _
    $region27: #{pallas_linear.1} parent=1 // pred_check_branch
      %172 = sbr.rel (0) target = $region29
    $region28: #{pallas_linear.1} parent=1 // pred_region
      %s174 = ssub.s32 256, 256
      %175 = vsyncadd [#allocation5], %s174
      %s176 = sshll.u32 [#allocation6], 4
      %s177 = int_to_ptr.vmem [resolvable:$true] %s176
      %182 = dma.vmem_to_hbm [thread:$0]  %s177, 256, %s3, [#allocation5], 128, 128, 8
    $region29: #{pallas_linear.1} parent=1 // pred_fallthru
      _
    // Predicated region
    $region30: #{pallas_linear.1} parent=1 // pred_check
      _
    $region31: #{pallas_linear.1} parent=1 // pred_check_branch
      %184 = sbr.rel (0) target = $region33
    $region32: #{pallas_linear.1} parent=1 // pred_region
      %185 = dma.done [#allocation5], 256
    $region33: #{pallas_linear.1} parent=1 // pred_fallthru
      _
    %186 = vsyncpa [#allocation4], 1
    %187 = vsyncpa [#allocation5], 1

</llo_original>
